<compile_context>
chip_gen: v7x
topology: tpu7x:2x2x1
jax: 0.10.0
libtpu: 0.0.40
codegen_flags: <defaults>
</compile_context>

<pallas_src>
import functools

import jax
import jax.numpy as jnp
from jax import lax
from jax.experimental import pallas as pl
from jax.experimental.pallas import tpu as pltpu

EPS = 1e-5


def _round_up(v, m):
    return ((v + m - 1) // m) * m


def _adain_kernel(x_ref, w_ref, b_ref, o_ref, *, inv_hw, eps, padded):
    # x_ref: (TBC, HWp)   w_ref, b_ref: (TBC, 1)   o_ref: (TBC, HWp)
    x = x_ref[...].astype(jnp.float32)

    # Per-instance statistics over the spatial (lane) axis. Use a precomputed
    # 1/HW constant instead of jnp.mean to avoid divides.
    s1 = jnp.sum(x, axis=1, keepdims=True)
    mean = s1 * inv_hw
    if padded:
        # Lanes beyond the true HW are zero-padded, so they contribute nothing
        # to sum(x) / sum(x*x); E[x^2] - mean^2 gives the biased variance of
        # the true elements without needing a mask.
        s2 = jnp.sum(x * x, axis=1, keepdims=True)
        var = jnp.maximum(s2 * inv_hw - mean * mean, 0.0)
    else:
        c = x - mean
        var = jnp.sum(c * c, axis=1, keepdims=True) * inv_hw

    inv_std = lax.rsqrt(var + eps)

    # Fold the affine into per-row scale/shift: out = x * scale + shift.
    w = w_ref[...].astype(jnp.float32)
    b = b_ref[...].astype(jnp.float32)
    scale = w * inv_std
    shift = b - mean * scale

    o_ref[...] = (x * scale + shift).astype(o_ref.dtype)


def adaptive_instance_norm_2d(x, weight, bias, eps=EPS):
    """x: (B, C, H, W); weight, bias: (B*C,) — AdaIN affine params."""
    B, C, H, W = x.shape
    bc, hw = B * C, H * W

    # Keep the lane (last) dim a multiple of 128 — pad with zeros if needed
    # (statistics use the true 1/HW; padded lanes are sliced off afterwards).
    hw_pad = hw if hw % 128 == 0 else _round_up(hw, 128)
    padded = hw_pad != hw

    x2d = x.reshape(bc, hw)
    if padded:
        x2d = jnp.pad(x2d, ((0, 0), (0, hw_pad - hw)))
    w2d = weight.reshape(bc, 1).astype(jnp.float32)
    b2d = bias.reshape(bc, 1).astype(jnp.float32)

    # Tile the instance axis. Target ~2 MiB per x tile so that
    # 2 inputs-bufs + 2 output-bufs stays well under the scoped-VMEM default
    # on every generation (v5e 16 MiB, v6e 32 MiB, v7x 32/64 MiB).
    itemsize = jnp.dtype(x2d.dtype).itemsize
    target_bytes = 2 * 1024 * 1024
    if bc <= 8:
        tbc = bc  # full dim — always a legal block shape
    else:
        tbc = max(8, (target_bytes // (hw_pad * itemsize)) // 8 * 8)
        tbc = min(tbc, _round_up(bc, 8))
    grid = (pl.cdiv(bc, tbc),)

    kernel = functools.partial(
        _adain_kernel, inv_hw=1.0 / hw, eps=eps, padded=padded
    )

    out2d = pl.pallas_call(
        kernel,
        out_shape=jax.ShapeDtypeStruct((bc, hw_pad), x.dtype),
        grid=grid,
        in_specs=[
            pl.BlockSpec((tbc, hw_pad), lambda i: (i, 0)),
            pl.BlockSpec((tbc, 1), lambda i: (i, 0)),
            pl.BlockSpec((tbc, 1), lambda i: (i, 0)),
        ],
        out_specs=pl.BlockSpec((tbc, hw_pad), lambda i: (i, 0)),
        compiler_params=pltpu.CompilerParams(
            dimension_semantics=("parallel",),
        ),
    )(x2d, w2d, b2d)

    if padded:
        out2d = out2d[:, :hw]
    return out2d.reshape(B, C, H, W)


def _reference(x, weight, bias, eps=EPS):
    B, C, H, W = x.shape
    xr = x.reshape(B * C, H * W).astype(jnp.float32)
    mean = xr.mean(axis=1, keepdims=True)
    var = ((xr - mean) ** 2).mean(axis=1, keepdims=True)
    out = (xr - mean) / jnp.sqrt(var + eps)
    out = out * weight.reshape(-1, 1) + bias.reshape(-1, 1)
    return out.reshape(B, C, H, W).astype(x.dtype)


if __name__ == "__main__":
    key = jax.random.PRNGKey(0)
    B, C, H, W = 2, 4, 16, 16  # num_features = C = 4

    kx, kw, kb = jax.random.split(key, 3)
    x = jax.random.normal(kx, (B, C, H, W), dtype=jnp.float32)
    # AdaIN weight/bias are assigned externally (e.g. from a style MLP) and
    # have shape (B * C,). Deterministic synthetic init:
    weight = jax.random.normal(kw, (B * C,), dtype=jnp.float32) * 0.5 + 1.0
    bias = jax.random.normal(kb, (B * C,), dtype=jnp.float32) * 0.1

    out = adaptive_instance_norm_2d(x, weight, bias)
    out = jax.block_until_ready(out)
    ref = _reference(x, weight, bias)
    assert out.shape == (B, C, H, W)
    assert jnp.allclose(out, ref, atol=1e-4, rtol=1e-4), "mismatch vs reference"

    # Odd spatial size (7x7 -> HW=49) exercises the lane-padding path.
    kx2 = jax.random.fold_in(kx, 1)
    x2 = jax.random.normal(kx2, (B, C, 7, 7), dtype=jnp.float32)
    out2 = jax.block_until_ready(adaptive_instance_norm_2d(x2, weight, bias))
    ref2 = _reference(x2, weight, bias)
    assert jnp.allclose(out2, ref2, atol=1e-4, rtol=1e-4), "mismatch (padded HW)"

    # TODO(synk): running_mean / running_var momentum update is a training-time
    # buffer side effect with no influence on the forward output; not emitted.
    print("KERNEL_OK")
</pallas_src>

<mosaic_0001>
module attributes {stable_mosaic.version = 11 : i64} {
  func.func @_adain_kernel(%arg0: i32, %arg1: memref<8x256xf32, #tpu.memory_space<vmem>>, %arg2: memref<8x1xf32, #tpu.memory_space<vmem>>, %arg3: memref<8x1xf32, #tpu.memory_space<vmem>>, %arg4: memref<8x256xf32, #tpu.memory_space<vmem>>) attributes {dimension_semantics = [#tpu.dimension_semantics<parallel>], iteration_bounds = array<i64: 1>, scalar_prefetch = 0 : i64, scratch_operands = 0 : i64, tpu.core_type = #tpu.core_type<tc>, window_params = [{transform_indices = @transform_0, window_bounds = array<i64: 8, 256>}, {transform_indices = @transform_1, window_bounds = array<i64: 8, 1>}, {transform_indices = @transform_2, window_bounds = array<i64: 8, 1>}, {transform_indices = @transform_3, window_bounds = array<i64: 8, 256>}]} {
    %c0 = arith.constant 0 : index
    %c0_0 = arith.constant 0 : index
    %0 = vector.load %arg1[%c0, %c0_0] : memref<8x256xf32, #tpu.memory_space<vmem>>, vector<8x256xf32>
    %cst = arith.constant dense<0.000000e+00> : vector<8xf32>
    %1 = vector.multi_reduction <add>, %0, %cst [1] : vector<8x256xf32> to vector<8xf32>
    %2 = vector.shape_cast %1 : vector<8xf32> to vector<8x1xf32>
    %cst_1 = arith.constant 3.906250e-03 : f32
    %3 = vector.broadcast %cst_1 : f32 to vector<8x1xf32>
    %4 = arith.mulf %2, %3 : vector<8x1xf32>
    %5 = vector.broadcast %4 : vector<8x1xf32> to vector<8x256xf32>
    %6 = arith.subf %0, %5 : vector<8x256xf32>
    %7 = arith.mulf %6, %6 : vector<8x256xf32>
    %cst_2 = arith.constant dense<0.000000e+00> : vector<8xf32>
    %8 = vector.multi_reduction <add>, %7, %cst_2 [1] : vector<8x256xf32> to vector<8xf32>
    %9 = vector.shape_cast %8 : vector<8xf32> to vector<8x1xf32>
    %cst_3 = arith.constant 3.906250e-03 : f32
    %10 = vector.broadcast %cst_3 : f32 to vector<8x1xf32>
    %11 = arith.mulf %9, %10 : vector<8x1xf32>
    %cst_4 = arith.constant 9.99999974E-6 : f32
    %12 = vector.broadcast %cst_4 : f32 to vector<8x1xf32>
    %13 = arith.addf %11, %12 : vector<8x1xf32>
    %14 = math.rsqrt %13 : vector<8x1xf32>
    %c0_5 = arith.constant 0 : index
    %c0_6 = arith.constant 0 : index
    %15 = vector.load %arg2[%c0_5, %c0_6] : memref<8x1xf32, #tpu.memory_space<vmem>>, vector<8x1xf32>
    %c0_7 = arith.constant 0 : index
    %c0_8 = arith.constant 0 : index
    %16 = vector.load %arg3[%c0_7, %c0_8] : memref<8x1xf32, #tpu.memory_space<vmem>>, vector<8x1xf32>
    %17 = arith.mulf %15, %14 : vector<8x1xf32>
    %18 = arith.mulf %4, %17 : vector<8x1xf32>
    %19 = arith.subf %16, %18 : vector<8x1xf32>
    %20 = vector.broadcast %17 : vector<8x1xf32> to vector<8x256xf32>
    %21 = arith.mulf %0, %20 : vector<8x256xf32>
    %22 = vector.broadcast %19 : vector<8x1xf32> to vector<8x256xf32>
    %23 = arith.addf %21, %22 : vector<8x256xf32>
    %c0_9 = arith.constant 0 : index
    %c0_10 = arith.constant 0 : index
    %24 = vector.load %arg4[%c0_9, %c0_10] : memref<8x256xf32, #tpu.memory_space<vmem>>, vector<8x256xf32>
    tpu.vector_store %arg4[%c0_9, %c0_10], %23 {strides = array<i32>} : memref<8x256xf32, #tpu.memory_space<vmem>>, vector<8x256xf32>,
    return
  }
  func.func @transform_0(%arg0: i32) -> (i32, i32) {
    %c0_i32 = arith.constant 0 : i32
    %c0_i32_0 = arith.constant 0 : i32
    return %arg0, %c0_i32 : i32, i32
  }
  func.func @transform_1(%arg0: i32) -> (i32, i32) {
    %c0_i32 = arith.constant 0 : i32
    %c0_i32_0 = arith.constant 0 : i32
    return %arg0, %c0_i32 : i32, i32
  }
  func.func @transform_2(%arg0: i32) -> (i32, i32) {
    %c0_i32 = arith.constant 0 : i32
    %c0_i32_0 = arith.constant 0 : i32
    return %arg0, %c0_i32 : i32, i32
  }
  func.func @transform_3(%arg0: i32) -> (i32, i32) {
    %c0_i32 = arith.constant 0 : i32
    %c0_i32_0 = arith.constant 0 : i32
    return %arg0, %c0_i32 : i32, i32
  }
}

</mosaic_0001>

<llo_original>
// kernel: tpu_custom_call.1
$region0: #{tpu_custom_call.1}
  #allocation0 [shape = 'u32[]', space=smem, size = 0x4, offset = 0x4, fixed_abs, tag = 'smem constant byte address 0x4 - core index']
  #allocation1 [shape = 'u32[144,128]{1,0:T(1,128)}', space=vmem, size = 0x12000, scoped, tag = 'internal scratch']
  %s0 = inlined_call_operand.vmem [shape: f32[8,256], index: 0, kind: input, shape index: {}]
  %s1 = inlined_call_operand.vmem [shape: f32[8,1], index: 1, kind: input, shape index: {}]
  %s2 = inlined_call_operand.vmem [shape: f32[8,1], index: 2, kind: input, shape index: {}]
  %s3 = inlined_call_operand.hbm [shape: f32[8,256], index: 3, kind: output, shape index: {}]
  %s4 = sld [smem:[#allocation0]]
  $region22: #{tpu_custom_call.1} parent=0
    _
  %s6 = ssub.s32 1, %s4
  %s7 = scalar_select 0, %s6, %s4
  $region1: #{tpu_custom_call.1} parent=0
    #allocation2 [shape = 'u8[8192]{0}', space=vmem, size = 0x2000, scoped, tag = 'output window, operand 0, single buffered']
    #allocation3 [shape = 's32[1]{0}', space=sflag, size = 0x4, scoped, tag = 'scoped memory for tpu_custom_call.1']
    %8 = vsyncpa [#allocation3], 0
    // Predicated region
    $region2: #{tpu_custom_call.1} parent=1 // pred_check
      _
    $region3: #{tpu_custom_call.1} parent=1 // pred_check_branch
      %10 = sbr.rel (0) target = $region5
    $region4: #{tpu_custom_call.1} parent=1 // pred_region
      _
    $region5: #{tpu_custom_call.1} parent=1 // pred_fallthru
      _
    // Predicated region
    $region6: #{tpu_custom_call.1} parent=1 // pred_check
      _
    $region7: #{tpu_custom_call.1} parent=1 // pred_check_branch
      %12 = sbr.rel (0) target = $region9
    $region8: #{tpu_custom_call.1} parent=1 // pred_region
      _
    $region9: #{tpu_custom_call.1} parent=1 // pred_fallthru
      _
    // Predicated region
    $region10: #{tpu_custom_call.1} parent=1 // pred_check
      _
    $region11: #{tpu_custom_call.1} parent=1 // pred_check_branch
      %14 = sbr.rel (0) target = $region13
    $region12: #{tpu_custom_call.1} parent=1 // pred_region
      _
    $region13: #{tpu_custom_call.1} parent=1 // pred_fallthru
      _
    %v15 = vld [vmem:[%s0] sm:$0xff]
    %v16 = vld [vmem:[%s0 + $0x8] sm:$0xff]
    %v17 = vadd.f32 %v15, %v16
    %18 = vadd.xlane.f32.xlu0 %v17
    %v19 = vpop.xlane.xlu0 %18
    %v20 = vmul.f32 %v19, 0.00390625
    %v21 = vsub.f32 %v15, %v20
    %v22 = vsub.f32 %v16, %v20
    %v23 = vmul.f32 %v21, %v21
    %v24 = vmul.f32 %v22, %v22
    %v25 = vadd.f32 %v23, %v24
    %26 = vadd.xlane.f32.xlu0 %v25
    %v27 = vpop.xlane.xlu0 %26
    %v28 = vmul.f32 %v27, 0.00390625
    %v29 = vadd.f32 %v28, 1e-05
    %v30 = vrsqrt.pop %v29
    %v31 = vld [vmem:[%s1] sm:$0xff]
    %v32 = vld [vmem:[%s2] sm:$0xff]
    %v33 = vmul.f32 %v31, %v30
    %v34 = vmul.f32 %v20, %v33
    %v35 = vsub.f32 %v32, %v34
    %37 = vset.pattern.permute.xlu0 0
    %38 = vperm.xlu0 %37, %v33
    %v39 = vpop.permute.xlu0 %38
    %v41 = vmul.f32 %v15, %v39
    %v42 = vmul.f32 %v16, %v39
    %44 = vset.pattern.permute.xlu0 0
    %45 = vperm.xlu0 %44, %v35
    %v46 = vpop.permute.xlu0 %45
    %v48 = vadd.f32 %v41, %v46
    %v49 = vadd.f32 %v42, %v46
    %50 = vst [vmem:[#allocation2] sm:$0xff] %v48
    %51 = vst [vmem:[#allocation2 + $0x8] sm:$0xff] %v49
    // Predicated region
    $region14: #{tpu_custom_call.1} parent=1 // pred_check
      _
    $region15: #{tpu_custom_call.1} parent=1 // pred_check_branch
      %53 = sbr.rel (0) target = $region17
    $region16: #{tpu_custom_call.1} parent=1 // pred_region
      %s55 = ssub.s32 256, 256
      %56 = vsyncadd [#allocation3], %s55
      %s58 = sshll.u32 [#allocation2], 4
      %s59 = int_to_ptr.vmem [resolvable:$true] %s58
      %61 = dma.vmem_to_hbm [thread:$0]  %s59, 256, %s3, [#allocation3]
    $region17: #{tpu_custom_call.1} parent=1 // pred_fallthru
      _
    // Predicated region
    $region18: #{tpu_custom_call.1} parent=1 // pred_check
      _
    $region19: #{tpu_custom_call.1} parent=1 // pred_check_branch
      %63 = sbr.rel (0) target = $region21
    $region20: #{tpu_custom_call.1} parent=1 // pred_region
      %64 = dma.done [#allocation3], 256
    $region21: #{tpu_custom_call.1} parent=1 // pred_fallthru
      _
    %65 = vsyncpa [#allocation3], 1

</llo_original>
